<compile_context>
chip_gen: v7x
topology: tpu7x:2x2x1
jax: 0.10.0
libtpu: 0.0.40
codegen_flags: <defaults>
</compile_context>

<pallas_src>
import jax
import jax.numpy as jnp
from jax.experimental import pallas as pl
from jax.experimental.pallas import tpu as pltpu


# ---------------------------------------------------------------------------
# Kernel body: identity copy of the current tile (works for 1-D and 2-D tiles).
# ---------------------------------------------------------------------------
def _copy_kernel(x_ref, o_ref):
    o_ref[...] = x_ref[...]


# ---------------------------------------------------------------------------
# Tiling helpers.
# ---------------------------------------------------------------------------
_VMEM_LIMIT_BYTES = 32 * 1024 * 1024   # explicit scoped-VMEM limit: safe on
                                       # v5e/v6e (128 MiB phys) and v7x (64 MiB)
_MIN_STEPS = 4                         # keep the pipeline fed / both v7x TCs busy
_MIN_BYTES_FOR_SPLIT = 1 << 20         # only force multi-step above ~1 MiB


def _sublane_multiple(dtype):
    itemsize = jnp.dtype(dtype).itemsize
    if itemsize >= 4:
        return 8           # f32 / i32
    if itemsize == 2:
        return 16          # bf16 / f16
    return 32              # int8 / fp8


def _choose_lane_width(total, max_lane=2048):
    """Largest multiple of 128 (<= max_lane) dividing `total`; 0 if none."""
    lw = 0
    for cand in range(128, max_lane + 1, 128):
        if total % cand == 0:
            lw = cand
    return lw


def _choose_rows_tile(rows, lane_width, dtype, vmem_bytes_per_buffer):
    """Byte-budgeted row tile for the (rows, lane_width) 2-D copy.

    Big enough to amortize per-step overhead (~0.35 us), small enough that
    in+out double buffering stays well under the scoped VMEM limit, and capped
    so arrays above ~1 MiB get at least _MIN_STEPS grid steps (pipelining +
    v7x megacore sharding)."""
    sub = _sublane_multiple(dtype)
    itemsize = jnp.dtype(dtype).itemsize
    row_bytes = lane_width * itemsize

    by_vmem = max(sub, (vmem_bytes_per_buffer // row_bytes) // sub * sub)
    target = by_vmem
    if rows * row_bytes > _MIN_BYTES_FOR_SPLIT:
        cap = pl.cdiv(rows, _MIN_STEPS)
        cap = max(sub, (cap // sub) * sub)
        target = min(target, cap)

    if rows <= target:
        return rows                      # full extent along rows is allowed
    return max(sub, (target // sub) * sub)


def _choose_chunk_1d(total, dtype, vmem_bytes_per_buffer):
    """Chunk length (elements) for the 1-D fallback copy.

    Chunks are multiples of 1024 elements (hence multiples of 128 lanes) so
    every block except the Pallas-masked final one uses full-lane stores."""
    itemsize = jnp.dtype(dtype).itemsize
    chunk = max(1024, (vmem_bytes_per_buffer // itemsize) // 1024 * 1024)
    if total * itemsize > _MIN_BYTES_FOR_SPLIT:
        cap = max(1024, (pl.cdiv(total, _MIN_STEPS) // 1024) * 1024)
        chunk = min(chunk, cap)
    if total <= chunk:
        return total                     # single full-extent block
    return chunk


# ---------------------------------------------------------------------------
# Forward.
# ---------------------------------------------------------------------------
def lview_forward(x, out_c, materialize=True, alias_input=False,
                  vmem_bytes_per_buffer=4 * 1024 * 1024):
    """Pallas implementation of LView.forward.

    x: 2-D or 4-D jnp array (4-D is NCHW).
    out_c: target last dimension after flattening.
    materialize: if False, skip the Pallas copy (reshape is a metadata op).
    alias_input: caller donates x; an aliased identity copy is a no-op, so
                 this path also skips the Pallas copy entirely.
    """
    assert x.ndim in (2, 4), f"invalid dimension of input {x.ndim:d}"

    if x.ndim == 2:
        # PyTorch returns the input unchanged in this branch.
        return x

    total = x.size
    assert total % out_c == 0, "total elements must be divisible by out_c"
    n_rows = total // out_c

    if not materialize or alias_input:
        # Zero-cost path: row-major flatten, identical to torch .view.
        return jnp.reshape(x, (n_rows, out_c))

    itemsize = jnp.dtype(x.dtype).itemsize
    compiler_params = pltpu.CompilerParams(
        dimension_semantics=("parallel",),   # shards grid across v7x's 2 TCs
        vmem_limit_bytes=_VMEM_LIMIT_BYTES,  # explicit: v5e default is only 16 MiB
    )
    cost = pl.CostEstimate(flops=0, transcendentals=0,
                           bytes_accessed=2 * total * itemsize)

    lane_width = _choose_lane_width(total)

    if lane_width > 0:
        # Lane-dense 2-D copy: last dim a large multiple of 128 so every store
        # is an unmasked full-lane vst; out_c is purely logical and restored
        # by the final (metadata-only) reshape.
        R, L = total // lane_width, lane_width
        x2d = jnp.reshape(x, (R, L))     # row-major, metadata-only
        rows_tile = _choose_rows_tile(R, L, x.dtype, vmem_bytes_per_buffer)
        grid = (pl.cdiv(R, rows_tile),)

        out_flat = pl.pallas_call(
            _copy_kernel,
            out_shape=jax.ShapeDtypeStruct((R, L), x.dtype),
            grid_spec=pltpu.PrefetchScalarGridSpec(
                num_scalar_prefetch=0,
                grid=grid,
                in_specs=[pl.BlockSpec((rows_tile, L), lambda i: (i, 0))],
                out_specs=pl.BlockSpec((rows_tile, L), lambda i: (i, 0)),
            ),
            compiler_params=compiler_params,
            cost_estimate=cost,
        )(x2d)
    else:
        # 1-D chunked fallback for totals with no multiple-of-128 divisor:
        # chunks are multiples of 1024 elements; only the final block is
        # masked by Pallas, so stores stay lane-dense regardless of out_c.
        x1d = jnp.reshape(x, (total,))   # metadata-only
        chunk = _choose_chunk_1d(total, x.dtype, vmem_bytes_per_buffer)
        grid = (pl.cdiv(total, chunk),)

        out_flat = pl.pallas_call(
            _copy_kernel,
            out_shape=jax.ShapeDtypeStruct((total,), x.dtype),
            grid_spec=pltpu.PrefetchScalarGridSpec(
                num_scalar_prefetch=0,
                grid=grid,
                in_specs=[pl.BlockSpec((chunk,), lambda i: (i,))],
                out_specs=pl.BlockSpec((chunk,), lambda i: (i,)),
            ),
            compiler_params=compiler_params,
            cost_estimate=cost,
        )(x1d)

    # Metadata-only reshape back to the logical (-1, out_c) view.
    return jnp.reshape(out_flat, (n_rows, out_c))


# ---------------------------------------------------------------------------
# Self-test.
# ---------------------------------------------------------------------------
if __name__ == "__main__":
    key = jax.random.PRNGKey(0)

    # 4-D case (NCHW), out_c = 16 -> output (2*4*16*16/16, 16) = (128, 16).
    out_c = 16
    x4 = jax.random.normal(key, (2, 4, 16, 16), dtype=jnp.float32)
    y4 = jax.block_until_ready(lview_forward(x4, out_c))
    ref4 = jnp.reshape(x4, (-1, out_c))
    assert y4.shape == ref4.shape
    assert jnp.array_equal(y4, ref4)

    # bf16 4-D case exercising the lane-dense rechunk path.
    x4b = jax.random.normal(jax.random.PRNGKey(2), (2, 8, 32, 32),
                            dtype=jnp.bfloat16)
    y4b = jax.block_until_ready(lview_forward(x4b, 32))
    assert jnp.array_equal(y4b, jnp.reshape(x4b, (-1, 32)))

    # Multi-step 2-D path (tiny VMEM budget forces grid > 1, pipeline active).
    x4m = jax.random.normal(jax.random.PRNGKey(4), (4, 8, 32, 32),
                            dtype=jnp.float32)
    y4m = jax.block_until_ready(
        lview_forward(x4m, 32, vmem_bytes_per_buffer=16 * 1024))
    assert jnp.array_equal(y4m, jnp.reshape(x4m, (-1, 32)))

    # Size with no multiple-of-128 divisor: 1-D fallback, single full block.
    x4c = jax.random.normal(jax.random.PRNGKey(3), (2, 3, 5, 7),
                            dtype=jnp.float32)
    y4c = jax.block_until_ready(lview_forward(x4c, 7))
    assert jnp.array_equal(y4c, jnp.reshape(x4c, (-1, 7)))

    # 1-D fallback with a ragged (masked) final block.
    x4r = jax.random.normal(jax.random.PRNGKey(5), (2, 3, 37, 41),
                            dtype=jnp.float32)
    y4r = jax.block_until_ready(
        lview_forward(x4r, 41, vmem_bytes_per_buffer=4096))
    assert jnp.array_equal(y4r, jnp.reshape(x4r, (-1, 41)))

    # alias_input / materialize=False short-circuit paths.
    y4a = jax.block_until_ready(lview_forward(x4, out_c, alias_input=True))
    assert jnp.array_equal(y4a, ref4)
    y4n = jax.block_until_ready(lview_forward(x4, out_c, materialize=False))
    assert jnp.array_equal(y4n, ref4)

    # 2-D case: passthrough (matches torch semantics).
    x2 = jax.random.normal(jax.random.PRNGKey(1), (8, 32), dtype=jnp.float32)
    y2 = jax.block_until_ready(lview_forward(x2, out_c))
    assert jnp.array_equal(y2, x2)

    print("KERNEL_OK")
</pallas_src>

<mosaic_0001>
module attributes {stable_mosaic.version = 11 : i64} {
  func.func @_copy_kernel(%arg0: i32, %arg1: memref<1x2048xf32, #tpu.memory_space<vmem>>, %arg2: memref<1x2048xf32, #tpu.memory_space<vmem>>) attributes {dimension_semantics = [#tpu.dimension_semantics<parallel>], iteration_bounds = array<i64: 1>, scalar_prefetch = 0 : i64, scratch_operands = 0 : i64, tpu.core_type = #tpu.core_type<tc>, window_params = [{transform_indices = @transform_0, window_bounds = array<i64: 1, 2048>}, {transform_indices = @transform_1, window_bounds = array<i64: 1, 2048>}]} {
    %c0 = arith.constant 0 : index
    %c0_0 = arith.constant 0 : index
    %0 = vector.load %arg1[%c0, %c0_0] : memref<1x2048xf32, #tpu.memory_space<vmem>>, vector<1x2048xf32>
    %c0_1 = arith.constant 0 : index
    %c0_2 = arith.constant 0 : index
    %1 = vector.load %arg2[%c0_1, %c0_2] : memref<1x2048xf32, #tpu.memory_space<vmem>>, vector<1x2048xf32>
    tpu.vector_store %arg2[%c0_1, %c0_2], %0 {strides = array<i32>} : memref<1x2048xf32, #tpu.memory_space<vmem>>, vector<1x2048xf32>,
    return
  }
  func.func @transform_0(%arg0: i32) -> (i32, i32) {
    %c0_i32 = arith.constant 0 : i32
    %c0_i32_0 = arith.constant 0 : i32
    return %arg0, %c0_i32 : i32, i32
  }
  func.func @transform_1(%arg0: i32) -> (i32, i32) {
    %c0_i32 = arith.constant 0 : i32
    %c0_i32_0 = arith.constant 0 : i32
    return %arg0, %c0_i32 : i32, i32
  }
}

</mosaic_0001>

<llo_original>
// kernel: tpu_custom_call.1
$region0: #{tpu_custom_call.1}
  #allocation0 [shape = 'u32[]', space=smem, size = 0x4, offset = 0x4, fixed_abs, tag = 'smem constant byte address 0x4 - core index']
  #allocation1 [shape = 'u32[144,128]{1,0:T(1,128)}', space=vmem, size = 0x12000, scoped, tag = 'internal scratch']
  %s0 = inlined_call_operand.hbm [shape: f32[1,2048], index: 0, kind: input, shape index: {}]
  %s1 = inlined_call_operand.hbm [shape: f32[1,2048], index: 1, kind: output, shape index: {}]
  %s2 = sld [smem:[#allocation0]]
  $region18: #{tpu_custom_call.1} parent=0
    _
  %s4 = ssub.s32 1, %s2
  %s5 = scalar_select 0, %s4, %s2
  $region1: #{tpu_custom_call.1} parent=0
    #allocation2 [shape = 'u8[8192]{0}', space=vmem, size = 0x2000, scoped, tag = 'input window, operand 0, single buffered']
    #allocation3 [shape = 's32[1]{0}', space=sflag, size = 0x4, scoped, tag = 'scoped memory for tpu_custom_call.1']
    #allocation4 [shape = 's32[1]{0}', space=sflag, size = 0x4, scoped, tag = 'scoped memory for tpu_custom_call.1']
    #allocation5 [shape = 'u8[8192]{0}', space=vmem, size = 0x2000, scoped, tag = 'output window, operand 0, single buffered']
    %6 = vsyncpa [#allocation3], 0
    %7 = vsyncpa [#allocation4], 0
    // Predicated region
    $region2: #{tpu_custom_call.1} parent=1 // pred_check
      _
    $region3: #{tpu_custom_call.1} parent=1 // pred_check_branch
      %9 = sbr.rel (0) target = $region5
    $region4: #{tpu_custom_call.1} parent=1 // pred_region
      %s11 = ssub.s32 256, 256
      %12 = vsyncadd [#allocation3], %s11
      %s14 = sshll.u32 [#allocation2], 4
      %s15 = int_to_ptr.vmem [resolvable:$true] %s14
      %17 = dma.hbm_to_vmem [thread:$0]  %s0, 256, %s15, [#allocation3]
    $region5: #{tpu_custom_call.1} parent=1 // pred_fallthru
      _
    // Predicated region
    $region6: #{tpu_custom_call.1} parent=1 // pred_check
      _
    $region7: #{tpu_custom_call.1} parent=1 // pred_check_branch
      %19 = sbr.rel (0) target = $region9
    $region8: #{tpu_custom_call.1} parent=1 // pred_region
      %20 = dma.done [#allocation3], 256
    $region9: #{tpu_custom_call.1} parent=1 // pred_fallthru
      _
    %v21 = vld [vmem:[#allocation2] sm:$0xff]
    %v22 = vld [vmem:[#allocation2 + $0x8] sm:$0xff]
    %23 = vst [vmem:[#allocation5] sm:$0xff] %v21
    %24 = vst [vmem:[#allocation5 + $0x8] sm:$0xff] %v22
    // Predicated region
    $region10: #{tpu_custom_call.1} parent=1 // pred_check
      _
    $region11: #{tpu_custom_call.1} parent=1 // pred_check_branch
      %26 = sbr.rel (0) target = $region13
    $region12: #{tpu_custom_call.1} parent=1 // pred_region
      %s28 = ssub.s32 256, 256
      %29 = vsyncadd [#allocation4], %s28
      %s31 = sshll.u32 [#allocation5], 4
      %s32 = int_to_ptr.vmem [resolvable:$true] %s31
      %34 = dma.vmem_to_hbm [thread:$0]  %s32, 256, %s1, [#allocation4]
    $region13: #{tpu_custom_call.1} parent=1 // pred_fallthru
      _
    // Predicated region
    $region14: #{tpu_custom_call.1} parent=1 // pred_check
      _
    $region15: #{tpu_custom_call.1} parent=1 // pred_check_branch
      %36 = sbr.rel (0) target = $region17
    $region16: #{tpu_custom_call.1} parent=1 // pred_region
      %37 = dma.done [#allocation4], 256
    $region17: #{tpu_custom_call.1} parent=1 // pred_fallthru
      _
    %38 = vsyncpa [#allocation3], 1
    %39 = vsyncpa [#allocation4], 1

</llo_original>
